<compile_context>
chip_gen: v7x
topology: tpu7x:2x2x1
jax: 0.10.0
libtpu: 0.0.40
codegen_flags: <defaults>
</compile_context>

<pallas_src>
import functools

import jax
import jax.numpy as jnp
from jax.experimental import pallas as pl
from jax.experimental.pallas import tpu as pltpu

LANE = 128
_MIB = 1 << 20
_FUSE_MAX_NODES = 1024      # fused single-call path for n_pad <= this
_FUSE_MAX_FEAT = 512        # ... and all padded feature dims <= this


# ----------------------------------------------------------------------------
# helpers
# ----------------------------------------------------------------------------
def _round_up(n, m):
    return ((n + m - 1) // m) * m


def _pad2d(a, rows, cols):
    return jnp.pad(a, ((0, rows - a.shape[0]), (0, cols - a.shape[1])))


def _largest_tile(n_pad, cap):
    """Largest multiple of 128 that divides n_pad and is <= cap (>=128)."""
    cap = max(cap, LANE)
    best = LANE
    d = LANE
    while d <= min(cap, n_pad):
        if n_pad % d == 0:
            best = d
        d += LANE
    return best


def _vmem_limit(budget_bytes):
    # 2x margin over the computed per-call buffer budget, floor 16 MiB (the v5e
    # scoped default), cap 40 MiB (safe headroom even on v7x's 64 MiB VMEM).
    return int(min(max(2 * budget_bytes, 16 * _MIB), 40 * _MIB))


# ----------------------------------------------------------------------------
# Path A: fused 3-layer kernel for small graphs (everything VMEM resident)
# ----------------------------------------------------------------------------
def _gcn3_fused_kernel(x_ref, adj_ref, w1_ref, b1_ref, w2_ref, b2_ref,
                       w3_ref, b3_ref, out_ref):
    adj = adj_ref[...]

    def conv(h_bf16, w_ref, b_ref, relu):
        s = jnp.dot(h_bf16, w_ref[...], preferred_element_type=jnp.float32)
        o = jnp.dot(adj, s.astype(jnp.bfloat16),
                    preferred_element_type=jnp.float32) + b_ref[...]
        return jnp.maximum(o, 0.0) if relu else o

    h = conv(x_ref[...], w1_ref, b1_ref, True).astype(jnp.bfloat16)
    h = conv(h, w2_ref, b2_ref, True).astype(jnp.bfloat16)
    # F.dropout(training=False) -> identity.
    out_ref[...] = conv(h, w3_ref, b3_ref, False).astype(out_ref.dtype)


def _fused_gcn3(x, adj, w1, b1, w2, b2, w3, b3):
    n_pad, f0 = x.shape
    f1 = w1.shape[1]
    f2 = w3.shape[1]
    fmax = max(f0, f1, f2)

    in_bytes = (n_pad * n_pad + n_pad * f0 + f0 * f1 + f1 * f1 + f1 * f2) * 2 \
        + (f1 + f1 + f2) * 4
    out_bytes = n_pad * f2 * 4
    tmp_bytes = 4 * n_pad * fmax * 4          # f32 intermediates inside the body
    budget = 2 * (in_bytes + out_bytes) + tmp_bytes

    flops = 2 * n_pad * (f0 * f1 + f1 * f1 + f1 * f2) \
        + 2 * n_pad * n_pad * (f1 + f1 + f2)

    operands = (x, adj, w1, b1, w2, b2, w3, b3)
    return pl.pallas_call(
        _gcn3_fused_kernel,
        out_shape=jax.ShapeDtypeStruct((n_pad, f2), jnp.float32),
        grid=(1,),
        in_specs=[pl.BlockSpec(a.shape, lambda i: (0, 0)) for a in operands],
        out_specs=pl.BlockSpec((n_pad, f2), lambda i: (0, 0)),
        compiler_params=pltpu.CompilerParams(
            dimension_semantics=("arbitrary",),
            vmem_limit_bytes=_vmem_limit(budget),
        ),
        cost_estimate=pl.CostEstimate(flops=int(flops), transcendentals=0,
                                      bytes_accessed=int(in_bytes + out_bytes)),
    )(*operands)


# ----------------------------------------------------------------------------
# Path B: general tiled path (scales with N)
# ----------------------------------------------------------------------------
def _support_kernel(h_ref, w_ref, s_ref):
    # s = h @ W, computed once per layer (never per adj row-tile).
    s_ref[...] = jnp.dot(h_ref[...], w_ref[...],
                         preferred_element_type=jnp.float32).astype(s_ref.dtype)


def _tiled_support(h, w, *, tm):
    n_pad, f_in = h.shape
    f_out = w.shape[1]
    budget = 2 * (tm * f_in * 2 + f_in * f_out * 2 + tm * f_out * 2)
    flops = 2 * n_pad * f_in * f_out
    bytes_acc = (n_pad * f_in + f_in * f_out + n_pad * f_out) * 2
    # TODO(synk): constant-index W block could use pipeline_mode=pl.Buffered(1)
    #             to save its double buffer; it is tiny here so left default.
    return pl.pallas_call(
        _support_kernel,
        out_shape=jax.ShapeDtypeStruct((n_pad, f_out), jnp.bfloat16),
        grid=(n_pad // tm,),
        in_specs=[
            pl.BlockSpec((tm, f_in), lambda i: (i, 0)),
            pl.BlockSpec((f_in, f_out), lambda i: (0, 0)),
        ],
        out_specs=pl.BlockSpec((tm, f_out), lambda i: (i, 0)),
        compiler_params=pltpu.CompilerParams(
            dimension_semantics=("parallel",),
            vmem_limit_bytes=_vmem_limit(budget),
        ),
        cost_estimate=pl.CostEstimate(flops=int(flops), transcendentals=0,
                                      bytes_accessed=int(bytes_acc)),
    )(h, w)


def _gcn_conv_kernel(*refs, apply_relu, fuse_next):
    """acc += adj_tile @ s_tile over k; epilogue: bias (+relu) (+ @W_next)."""
    if fuse_next:
        adj_ref, s_ref, b_ref, wn_ref, out_ref, acc_ref = refs
    else:
        adj_ref, s_ref, b_ref, out_ref, acc_ref = refs
    k = pl.program_id(1)

    @pl.when(k == 0)
    def _():
        acc_ref[...] = jnp.zeros_like(acc_ref)

    acc_ref[...] += jnp.dot(adj_ref[...], s_ref[...],
                            preferred_element_type=jnp.float32)

    @pl.when(k == pl.num_programs(1) - 1)
    def _():
        h = acc_ref[...] + b_ref[...]
        if apply_relu:
            h = jnp.maximum(h, 0.0)
        if fuse_next:
            # Emit the NEXT layer's support tile directly (no x@W recompute,
            # no extra HBM round-trip of h).
            out_ref[...] = jnp.dot(h.astype(jnp.bfloat16), wn_ref[...],
                                   preferred_element_type=jnp.float32
                                   ).astype(out_ref.dtype)
        else:
            out_ref[...] = h.astype(out_ref.dtype)


def _tiled_conv(adj, s, b, w_next, *, apply_relu, out_dtype, tm, tk):
    n_pad = adj.shape[0]
    f_mid = s.shape[1]
    fuse_next = w_next is not None
    f_out = w_next.shape[1] if fuse_next else f_mid
    out_itemsize = jnp.dtype(out_dtype).itemsize

    kernel = functools.partial(_gcn_conv_kernel, apply_relu=apply_relu,
                               fuse_next=fuse_next)

    in_specs = [
        pl.BlockSpec((tm, tk), lambda i, k: (i, k)),      # adj row/col tile
        pl.BlockSpec((tk, f_mid), lambda i, k: (k, 0)),   # support tile
        pl.BlockSpec((1, f_mid), lambda i, k: (0, 0)),    # bias (lane padded)
    ]
    operands = [adj, s, b]
    if fuse_next:
        in_specs.append(pl.BlockSpec((f_mid, f_out), lambda i, k: (0, 0)))
        operands.append(w_next)

    budget = (2 * tm * tk * 2            # adj double buffer (bf16)
              + 2 * tk * f_mid * 2       # support double buffer
              + 2 * f_mid * f_out * 2    # W_next double buffer
              + 2 * tm * f_out * out_itemsize
              + tm * f_mid * 4)          # f32 accumulator scratch

    flops = 2 * n_pad * n_pad * f_mid \
        + (2 * n_pad * f_mid * f_out if fuse_next else 0)
    bytes_acc = n_pad * n_pad * 2 \
        + (n_pad // tm) * n_pad * f_mid * 2 \
        + n_pad * f_out * out_itemsize

    # TODO(synk): for genuinely sparse adjacencies, switch to a block-sparse SpMM
    #             using PrefetchScalarGridSpec (prefetch nonzero adj column-block
    #             indices per row tile) so HBM traffic scales with nnz, not N^2.
    # TODO(synk): on v7x, adj could be stored fp8 (e4m3) to halve the dominant
    #             HBM stream (validate precision of the 1/deg entries first).
    return pl.pallas_call(
        kernel,
        out_shape=jax.ShapeDtypeStruct((n_pad, f_out), out_dtype),
        grid=(n_pad // tm, n_pad // tk),
        in_specs=in_specs,
        out_specs=pl.BlockSpec((tm, f_out), lambda i, k: (i, 0)),
        scratch_shapes=[pltpu.VMEM((tm, f_mid), jnp.float32)],
        compiler_params=pltpu.CompilerParams(
            dimension_semantics=("parallel", "arbitrary"),
            vmem_limit_bytes=_vmem_limit(budget),
        ),
        cost_estimate=pl.CostEstimate(flops=int(flops), transcendentals=0,
                                      bytes_accessed=int(bytes_acc)),
    )(*operands)


# ----------------------------------------------------------------------------
# Module forward (eval mode)
# ----------------------------------------------------------------------------
@jax.jit
def gcn_layer_3(x, adj, params):
    """relu(gc1) -> relu(gc2) -> dropout(identity, eval) -> gc3."""
    w1, b1, w2, b2, w3, b3 = params
    n, nfeat = x.shape
    nhid = w1.shape[1]
    nclass = w3.shape[1]

    f0 = _round_up(nfeat, LANE)
    f1 = _round_up(nhid, LANE)
    f2 = _round_up(nclass, LANE)
    n_pad = _round_up(n, LANE)   # 128-multiple: lane-dense adj, full MXU K passes

    # Zero padding is REQUIRED for exactness: padded adj columns are zero so the
    # relu(bias) values landing in padded rows of intermediates never contribute.
    x_p = _pad2d(x, n_pad, f0).astype(jnp.bfloat16)
    adj_p = _pad2d(adj, n_pad, n_pad).astype(jnp.bfloat16)
    w1_p = _pad2d(w1, f0, f1).astype(jnp.bfloat16)
    w2_p = _pad2d(w2, f1, f1).astype(jnp.bfloat16)
    w3_p = _pad2d(w3, f1, f2).astype(jnp.bfloat16)
    b1_p = _pad2d(b1.reshape(1, -1), 1, f1).astype(jnp.float32)
    b2_p = _pad2d(b2.reshape(1, -1), 1, f1).astype(jnp.float32)
    b3_p = _pad2d(b3.reshape(1, -1), 1, f2).astype(jnp.float32)

    if n_pad <= _FUSE_MAX_NODES and max(f0, f1, f2) <= _FUSE_MAX_FEAT:
        # Small graph: single fused kernel, adj read once, no HBM intermediates.
        out = _fused_gcn3(x_p, adj_p, w1_p, b1_p, w2_p, b2_p, w3_p, b3_p)
    else:
        # Row tile: 128-multiple divisor of n_pad, <=512, and <= n_pad/2 so the
        # "parallel" row axis has >=2 tiles for v7x's two TensorCores.
        tm = _largest_tile(n_pad, min(512, n_pad // 2))
        tk = _largest_tile(n_pad, 512)

        s1 = _tiled_support(x_p, w1_p, tm=tm)                      # x @ W1
        s2 = _tiled_conv(adj_p, s1, b1_p, w2_p, apply_relu=True,   # relu(adj@s1+b1)@W2
                         out_dtype=jnp.bfloat16, tm=tm, tk=tk)
        s3 = _tiled_conv(adj_p, s2, b2_p, w3_p, apply_relu=True,   # relu(adj@s2+b2)@W3
                         out_dtype=jnp.bfloat16, tm=tm, tk=tk)
        # dropout (eval) == identity.
        out = _tiled_conv(adj_p, s3, b3_p, None, apply_relu=False, # adj@s3+b3
                          out_dtype=jnp.float32, tm=tm, tk=tk)
    # TODO(synk): training-mode dropout would use pltpu.prng_seed/prng_random_bits.
    return out[:n, :nclass]


# ----------------------------------------------------------------------------
# Params + reference
# ----------------------------------------------------------------------------
def init_params(key, nfeat, nhid, nclass):
    """Mirror GraphConvolution.reset_parameters: U(-1/sqrt(out), 1/sqrt(out))."""
    ks = jax.random.split(key, 6)

    def uinit(k, shape, fan_out):
        bound = 1.0 / jnp.sqrt(jnp.float32(fan_out))
        return jax.random.uniform(k, shape, jnp.float32, -bound, bound)

    w1 = uinit(ks[0], (nfeat, nhid), nhid)
    b1 = uinit(ks[1], (1, nhid), nhid)
    w2 = uinit(ks[2], (nhid, nhid), nhid)
    b2 = uinit(ks[3], (1, nhid), nhid)
    w3 = uinit(ks[4], (nhid, nclass), nclass)
    b3 = uinit(ks[5], (1, nclass), nclass)
    return (w1, b1, w2, b2, w3, b3)


def gcn_layer_3_ref(x, adj, params, mxu_dtype=jnp.float32):
    """Reference. mxu_dtype=bfloat16 reproduces the kernel's matmul-input precision
    (with f32 accumulation); float32 is the exact PyTorch-equivalent math."""
    w1, b1, w2, b2, w3, b3 = params

    def conv(h, w, b, relu):
        s = jnp.dot(h.astype(mxu_dtype), w.astype(mxu_dtype),
                    preferred_element_type=jnp.float32)
        o = jnp.dot(adj.astype(mxu_dtype), s.astype(mxu_dtype),
                    preferred_element_type=jnp.float32) + b
        return jnp.maximum(o, 0.0) if relu else o

    h = conv(x, w1, b1, True)
    h = conv(h, w2, b2, True)
    return conv(h, w3, b3, False)


# ----------------------------------------------------------------------------
if __name__ == "__main__":
    def make_inputs(key, n, nfeat, nhid, nclass):
        kx, ka, kp = jax.random.split(key, 3)
        x = jax.random.normal(kx, (n, nfeat), jnp.float32)
        # Symmetric, row-normalized dense adjacency with self-loops.
        a = (jax.random.uniform(ka, (n, n)) < 0.1).astype(jnp.float32)
        a = jnp.maximum(a, a.T) + jnp.eye(n, dtype=jnp.float32)
        adj = a / jnp.sum(a, axis=1, keepdims=True)
        params = init_params(kp, nfeat, nhid, nclass)
        return x, adj, params

    key = jax.random.PRNGKey(0)
    k_small, k_big = jax.random.split(key)

    # 1) Toy graph -> fused single-call path.
    N, nfeat, nhid, nclass = 64, 32, 32, 16
    x, adj, params = make_inputs(k_small, N, nfeat, nhid, nclass)
    out = jax.block_until_ready(gcn_layer_3(x, adj, params))
    assert out.shape == (N, nclass)

    ref_bf16 = gcn_layer_3_ref(x, adj, params, mxu_dtype=jnp.bfloat16)
    assert jnp.allclose(out, ref_bf16, atol=1e-3, rtol=1e-3), \
        float(jnp.max(jnp.abs(out - ref_bf16)))
    ref_f32 = gcn_layer_3_ref(x, adj, params, mxu_dtype=jnp.float32)
    assert jnp.allclose(out, ref_f32, atol=1e-1, rtol=1e-1)

    # 2) Larger graph -> general tiled path (support kernel + k-tiled adj
    #    aggregation with fused next-layer epilogue, 2-D "parallel"/"arbitrary" grid).
    N2 = 1100
    x2, adj2, params2 = make_inputs(k_big, N2, nfeat, nhid, nclass)
    out2 = jax.block_until_ready(gcn_layer_3(x2, adj2, params2))
    assert out2.shape == (N2, nclass)

    ref2_bf16 = gcn_layer_3_ref(x2, adj2, params2, mxu_dtype=jnp.bfloat16)
    assert jnp.allclose(out2, ref2_bf16, atol=2e-3, rtol=2e-3), \
        float(jnp.max(jnp.abs(out2 - ref2_bf16)))
    ref2_f32 = gcn_layer_3_ref(x2, adj2, params2, mxu_dtype=jnp.float32)
    assert jnp.allclose(out2, ref2_f32, atol=1e-1, rtol=1e-1)

    print("KERNEL_OK")
</pallas_src>

<mosaic_0001>
module attributes {stable_mosaic.version = 11 : i64} {
  func.func @_gcn3_fused_kernel(%arg0: i32, %arg1: memref<128x128xbf16, #tpu.memory_space<vmem>>, %arg2: memref<128x128xbf16, #tpu.memory_space<vmem>>, %arg3: memref<128x128xbf16, #tpu.memory_space<vmem>>, %arg4: memref<1x128xf32, #tpu.memory_space<vmem>>, %arg5: memref<128x128xbf16, #tpu.memory_space<vmem>>, %arg6: memref<1x128xf32, #tpu.memory_space<vmem>>, %arg7: memref<128x128xbf16, #tpu.memory_space<vmem>>, %arg8: memref<1x128xf32, #tpu.memory_space<vmem>>, %arg9: memref<128x128xf32, #tpu.memory_space<vmem>>) attributes {dimension_semantics = [#tpu.dimension_semantics<arbitrary>], iteration_bounds = array<i64: 1>, scalar_prefetch = 0 : i64, scratch_operands = 0 : i64, tpu.core_type = #tpu.core_type<tc>, window_params = [{pipeline_mode = #tpu.pipeline_mode<synchronous>, transform_indices = @transform_0, window_bounds = array<i64: 128, 128>}, {pipeline_mode = #tpu.pipeline_mode<synchronous>, transform_indices = @transform_1, window_bounds = array<i64: 128, 128>}, {pipeline_mode = #tpu.pipeline_mode<synchronous>, transform_indices = @transform_2, window_bounds = array<i64: 128, 128>}, {pipeline_mode = #tpu.pipeline_mode<synchronous>, transform_indices = @transform_3, window_bounds = array<i64: 1, 128>}, {pipeline_mode = #tpu.pipeline_mode<synchronous>, transform_indices = @transform_4, window_bounds = array<i64: 128, 128>}, {pipeline_mode = #tpu.pipeline_mode<synchronous>, transform_indices = @transform_5, window_bounds = array<i64: 1, 128>}, {pipeline_mode = #tpu.pipeline_mode<synchronous>, transform_indices = @transform_6, window_bounds = array<i64: 128, 128>}, {pipeline_mode = #tpu.pipeline_mode<synchronous>, transform_indices = @transform_7, window_bounds = array<i64: 1, 128>}, {pipeline_mode = #tpu.pipeline_mode<synchronous>, transform_indices = @transform_8, window_bounds = array<i64: 128, 128>}]} {
    %c0 = arith.constant 0 : index
    %c0_0 = arith.constant 0 : index
    %0 = vector.load %arg2[%c0, %c0_0] : memref<128x128xbf16, #tpu.memory_space<vmem>>, vector<128x128xbf16>
    %c0_1 = arith.constant 0 : index
    %c0_2 = arith.constant 0 : index
    %1 = vector.load %arg1[%c0_1, %c0_2] : memref<128x128xbf16, #tpu.memory_space<vmem>>, vector<128x128xbf16>
    %c0_3 = arith.constant 0 : index
    %c0_4 = arith.constant 0 : index
    %2 = vector.load %arg3[%c0_3, %c0_4] : memref<128x128xbf16, #tpu.memory_space<vmem>>, vector<128x128xbf16>
    %cst = arith.constant dense<0.000000e+00> : vector<128x128xf32>
    %3 = tpu.matmul %1, %2, %cst {dimension_numbers = #tpu.dot_dimension_numbers<[1], [0], [0], [1], [0, 0, 1, 1], [], []>} : vector<128x128xbf16>, vector<128x128xbf16>, vector<128x128xf32> -> vector<128x128xf32>
    %4 = arith.truncf %3 : vector<128x128xf32> to vector<128x128xbf16>
    %cst_5 = arith.constant dense<0.000000e+00> : vector<128x128xf32>
    %5 = tpu.matmul %0, %4, %cst_5 {dimension_numbers = #tpu.dot_dimension_numbers<[1], [0], [0], [1], [0, 0, 1, 1], [], []>} : vector<128x128xbf16>, vector<128x128xbf16>, vector<128x128xf32> -> vector<128x128xf32>
    %c0_6 = arith.constant 0 : index
    %c0_7 = arith.constant 0 : index
    %6 = vector.load %arg4[%c0_6, %c0_7] : memref<1x128xf32, #tpu.memory_space<vmem>>, vector<1x128xf32>
    %7 = vector.broadcast %6 : vector<1x128xf32> to vector<128x128xf32>
    %8 = arith.addf %5, %7 : vector<128x128xf32>
    %cst_8 = arith.constant 0.000000e+00 : f32
    %9 = vector.broadcast %cst_8 : f32 to vector<128x128xf32>
    %10 = arith.maximumf %8, %9 : vector<128x128xf32>
    %11 = arith.truncf %10 : vector<128x128xf32> to vector<128x128xbf16>
    %c0_9 = arith.constant 0 : index
    %c0_10 = arith.constant 0 : index
    %12 = vector.load %arg5[%c0_9, %c0_10] : memref<128x128xbf16, #tpu.memory_space<vmem>>, vector<128x128xbf16>
    %cst_11 = arith.constant dense<0.000000e+00> : vector<128x128xf32>
    %13 = tpu.matmul %11, %12, %cst_11 {dimension_numbers = #tpu.dot_dimension_numbers<[1], [0], [0], [1], [0, 0, 1, 1], [], []>} : vector<128x128xbf16>, vector<128x128xbf16>, vector<128x128xf32> -> vector<128x128xf32>
    %14 = arith.truncf %13 : vector<128x128xf32> to vector<128x128xbf16>
    %cst_12 = arith.constant dense<0.000000e+00> : vector<128x128xf32>
    %15 = tpu.matmul %0, %14, %cst_12 {dimension_numbers = #tpu.dot_dimension_numbers<[1], [0], [0], [1], [0, 0, 1, 1], [], []>} : vector<128x128xbf16>, vector<128x128xbf16>, vector<128x128xf32> -> vector<128x128xf32>
    %c0_13 = arith.constant 0 : index
    %c0_14 = arith.constant 0 : index
    %16 = vector.load %arg6[%c0_13, %c0_14] : memref<1x128xf32, #tpu.memory_space<vmem>>, vector<1x128xf32>
    %17 = vector.broadcast %16 : vector<1x128xf32> to vector<128x128xf32>
    %18 = arith.addf %15, %17 : vector<128x128xf32>
    %cst_15 = arith.constant 0.000000e+00 : f32
    %19 = vector.broadcast %cst_15 : f32 to vector<128x128xf32>
    %20 = arith.maximumf %18, %19 : vector<128x128xf32>
    %21 = arith.truncf %20 : vector<128x128xf32> to vector<128x128xbf16>
    %c0_16 = arith.constant 0 : index
    %c0_17 = arith.constant 0 : index
    %22 = vector.load %arg7[%c0_16, %c0_17] : memref<128x128xbf16, #tpu.memory_space<vmem>>, vector<128x128xbf16>
    %cst_18 = arith.constant dense<0.000000e+00> : vector<128x128xf32>
    %23 = tpu.matmul %21, %22, %cst_18 {dimension_numbers = #tpu.dot_dimension_numbers<[1], [0], [0], [1], [0, 0, 1, 1], [], []>} : vector<128x128xbf16>, vector<128x128xbf16>, vector<128x128xf32> -> vector<128x128xf32>
    %24 = arith.truncf %23 : vector<128x128xf32> to vector<128x128xbf16>
    %cst_19 = arith.constant dense<0.000000e+00> : vector<128x128xf32>
    %25 = tpu.matmul %0, %24, %cst_19 {dimension_numbers = #tpu.dot_dimension_numbers<[1], [0], [0], [1], [0, 0, 1, 1], [], []>} : vector<128x128xbf16>, vector<128x128xbf16>, vector<128x128xf32> -> vector<128x128xf32>
    %c0_20 = arith.constant 0 : index
    %c0_21 = arith.constant 0 : index
    %26 = vector.load %arg8[%c0_20, %c0_21] : memref<1x128xf32, #tpu.memory_space<vmem>>, vector<1x128xf32>
    %27 = vector.broadcast %26 : vector<1x128xf32> to vector<128x128xf32>
    %28 = arith.addf %25, %27 : vector<128x128xf32>
    %c0_22 = arith.constant 0 : index
    %c0_23 = arith.constant 0 : index
    %29 = vector.load %arg9[%c0_22, %c0_23] : memref<128x128xf32, #tpu.memory_space<vmem>>, vector<128x128xf32>
    tpu.vector_store %arg9[%c0_22, %c0_23], %28 {strides = array<i32>} : memref<128x128xf32, #tpu.memory_space<vmem>>, vector<128x128xf32>,
    return
  }
  func.func @transform_0(%arg0: i32) -> (i32, i32) {
    %c0_i32 = arith.constant 0 : i32
    %c0_i32_0 = arith.constant 0 : i32
    %c0_i32_1 = arith.constant 0 : i32
    return %c0_i32, %c0_i32_0 : i32, i32
  }
  func.func @transform_1(%arg0: i32) -> (i32, i32) {
    %c0_i32 = arith.constant 0 : i32
    %c0_i32_0 = arith.constant 0 : i32
    %c0_i32_1 = arith.constant 0 : i32
    return %c0_i32, %c0_i32_0 : i32, i32
  }
  func.func @transform_2(%arg0: i32) -> (i32, i32) {
    %c0_i32 = arith.constant 0 : i32
    %c0_i32_0 = arith.constant 0 : i32
    %c0_i32_1 = arith.constant 0 : i32
    return %c0_i32, %c0_i32_0 : i32, i32
  }
  func.func @transform_3(%arg0: i32) -> (i32, i32) {
    %c0_i32 = arith.constant 0 : i32
    %c0_i32_0 = arith.constant 0 : i32
    %c0_i32_1 = arith.constant 0 : i32
    return %c0_i32, %c0_i32_0 : i32, i32
  }
  func.func @transform_4(%arg0: i32) -> (i32, i32) {
    %c0_i32 = arith.constant 0 : i32
    %c0_i32_0 = arith.constant 0 : i32
    %c0_i32_1 = arith.constant 0 : i32
    return %c0_i32, %c0_i32_0 : i32, i32
  }
  func.func @transform_5(%arg0: i32) -> (i32, i32) {
    %c0_i32 = arith.constant 0 : i32
    %c0_i32_0 = arith.constant 0 : i32
    %c0_i32_1 = arith.constant 0 : i32
    return %c0_i32, %c0_i32_0 : i32, i32
  }
  func.func @transform_6(%arg0: i32) -> (i32, i32) {
    %c0_i32 = arith.constant 0 : i32
    %c0_i32_0 = arith.constant 0 : i32
    %c0_i32_1 = arith.constant 0 : i32
    return %c0_i32, %c0_i32_0 : i32, i32
  }
  func.func @transform_7(%arg0: i32) -> (i32, i32) {
    %c0_i32 = arith.constant 0 : i32
    %c0_i32_0 = arith.constant 0 : i32
    %c0_i32_1 = arith.constant 0 : i32
    return %c0_i32, %c0_i32_0 : i32, i32
  }
  func.func @transform_8(%arg0: i32) -> (i32, i32) {
    %c0_i32 = arith.constant 0 : i32
    %c0_i32_0 = arith.constant 0 : i32
    %c0_i32_1 = arith.constant 0 : i32
    return %c0_i32, %c0_i32_0 : i32, i32
  }
}

</mosaic_0001>

<llo_original>
// kernel: gcn_layer_3.1
$region0: #{gcn_layer_3.1}
  #allocation0 [shape = 'u32[]', space=smem, size = 0x4, offset = 0x4, fixed_abs, tag = 'smem constant byte address 0x4 - core index']
  #allocation1 [shape = 'u32[144,128]{1,0:T(1,128)}', space=vmem, size = 0x12000, scoped, tag = 'internal scratch']
  %s0 = inlined_call_operand.vmem [shape: bf16[128,128], index: 0, kind: input, shape index: {}]
  %s1 = inlined_call_operand.vmem [shape: bf16[128,128], index: 1, kind: input, shape index: {}]
  %s2 = inlined_call_operand.vmem [shape: bf16[128,128], index: 2, kind: input, shape index: {}]
  %s3 = inlined_call_operand.vmem [shape: f32[1,128], index: 3, kind: input, shape index: {}]
  %s4 = inlined_call_operand.vmem [shape: bf16[128,128], index: 4, kind: input, shape index: {}]
  %s5 = inlined_call_operand.vmem [shape: f32[1,128], index: 5, kind: input, shape index: {}]
  %s6 = inlined_call_operand.vmem [shape: bf16[128,128], index: 6, kind: input, shape index: {}]
  %s7 = inlined_call_operand.vmem [shape: f32[1,128], index: 7, kind: input, shape index: {}]
  %s8 = inlined_call_operand.vmem [shape: f32[128,128], index: 8, kind: output, shape index: {}]
  %s9 = sld [smem:[#allocation0]]
  $region42: #{gcn_layer_3.1} parent=0
    _
  %s11 = ssub.s32 1, %s9
  %s12 = scalar_select 0, %s11, %s9
  // Predicated region
  $region2: #{gcn_layer_3.1} parent=0 // pred_check
    _
  $region3: #{gcn_layer_3.1} parent=0 // pred_check_branch
    %14 = sbr.rel (0) target = $region5
  $region4: #{gcn_layer_3.1} parent=0 // pred_region
    _
  $region5: #{gcn_layer_3.1} parent=0 // pred_fallthru
    _
  // Predicated region
  $region6: #{gcn_layer_3.1} parent=0 // pred_check
    _
  $region7: #{gcn_layer_3.1} parent=0 // pred_check_branch
    %16 = sbr.rel (0) target = $region9
  $region8: #{gcn_layer_3.1} parent=0 // pred_region
    _
  $region9: #{gcn_layer_3.1} parent=0 // pred_fallthru
    _
  // Predicated region
  $region10: #{gcn_layer_3.1} parent=0 // pred_check
    _
  $region11: #{gcn_layer_3.1} parent=0 // pred_check_branch
    %18 = sbr.rel (0) target = $region13
  $region12: #{gcn_layer_3.1} parent=0 // pred_region
    _
  $region13: #{gcn_layer_3.1} parent=0 // pred_fallthru
    _
  // Predicated region
  $region14: #{gcn_layer_3.1} parent=0 // pred_check
    _
  $region15: #{gcn_layer_3.1} parent=0 // pred_check_branch
    %20 = sbr.rel (0) target = $region17
  $region16: #{gcn_layer_3.1} parent=0 // pred_region
    _
  $region17: #{gcn_layer_3.1} parent=0 // pred_fallthru
    _
  // Predicated region
  $region18: #{gcn_layer_3.1} parent=0 // pred_check
    _
  $region19: #{gcn_layer_3.1} parent=0 // pred_check_branch
    %22 = sbr.rel (0) target = $region21
  $region20: #{gcn_layer_3.1} parent=0 // pred_region
    _
  $region21: #{gcn_layer_3.1} parent=0 // pred_fallthru
    _
  // Predicated region
  $region22: #{gcn_layer_3.1} parent=0 // pred_check
    _
  $region23: #{gcn_layer_3.1} parent=0 // pred_check_branch
    %24 = sbr.rel (0) target = $region25
  $region24: #{gcn_layer_3.1} parent=0 // pred_region
    _
  $region25: #{gcn_layer_3.1} parent=0 // pred_fallthru
    _
  // Predicated region
  $region26: #{gcn_layer_3.1} parent=0 // pred_check
    _
  $region27: #{gcn_layer_3.1} parent=0 // pred_check_branch
    %26 = sbr.rel (0) target = $region29
  $region28: #{gcn_layer_3.1} parent=0 // pred_region
    _
  $region29: #{gcn_layer_3.1} parent=0 // pred_fallthru
    _
  // Predicated region
  $region30: #{gcn_layer_3.1} parent=0 // pred_check
    _
  $region31: #{gcn_layer_3.1} parent=0 // pred_check_branch
    %28 = sbr.rel (0) target = $region33
  $region32: #{gcn_layer_3.1} parent=0 // pred_region
    _
  $region33: #{gcn_layer_3.1} parent=0 // pred_fallthru
    _
  %v30 = vld [vmem:[%s1] sm:$0xf]
  %v31 = vld [vmem:[%s1 + $0x4] sm:$0xf]
  %v32 = vld [vmem:[%s1 + $0x8] sm:$0xf]
  %v33 = vld [vmem:[%s1 + $0xc] sm:$0xf]
  %v34 = vld [vmem:[%s1 + $0x10] sm:$0xf]
  %v35 = vld [vmem:[%s1 + $0x14] sm:$0xf]
  %v36 = vld [vmem:[%s1 + $0x18] sm:$0xf]
  %v37 = vld [vmem:[%s1 + $0x1c] sm:$0xf]
  %v38 = vld [vmem:[%s1 + $0x20] sm:$0xf]
  %v39 = vld [vmem:[%s1 + $0x24] sm:$0xf]
  %v40 = vld [vmem:[%s1 + $0x28] sm:$0xf]
  %v41 = vld [vmem:[%s1 + $0x2c] sm:$0xf]
  %v42 = vld [vmem:[%s1 + $0x30] sm:$0xf]
  %v43 = vld [vmem:[%s1 + $0x34] sm:$0xf]
  %v44 = vld [vmem:[%s1 + $0x38] sm:$0xf]
  %v45 = vld [vmem:[%s1 + $0x3c] sm:$0xf]
  %v46 = vld [vmem:[%s0] sm:$0xf]
  %v47 = vld [vmem:[%s0 + $0x4] sm:$0xf]
  %v48 = vld [vmem:[%s0 + $0x8] sm:$0xf]
  %v49 = vld [vmem:[%s0 + $0xc] sm:$0xf]
  %v50 = vld [vmem:[%s0 + $0x10] sm:$0xf]
  %v51 = vld [vmem:[%s0 + $0x14] sm:$0xf]
  %v52 = vld [vmem:[%s0 + $0x18] sm:$0xf]
  %v53 = vld [vmem:[%s0 + $0x1c] sm:$0xf]
  %v54 = vld [vmem:[%s0 + $0x20] sm:$0xf]
  %v55 = vld [vmem:[%s0 + $0x24] sm:$0xf]
  %v56 = vld [vmem:[%s0 + $0x28] sm:$0xf]
  %v57 = vld [vmem:[%s0 + $0x2c] sm:$0xf]
  %v58 = vld [vmem:[%s0 + $0x30] sm:$0xf]
  %v59 = vld [vmem:[%s0 + $0x34] sm:$0xf]
  %v60 = vld [vmem:[%s0 + $0x38] sm:$0xf]
  %v61 = vld [vmem:[%s0 + $0x3c] sm:$0xf]
  %v62 = vld [vmem:[%s2] sm:$0xf]
  %v63 = vld [vmem:[%s2 + $0x4] sm:$0xf]
  %v64 = vld [vmem:[%s2 + $0x8] sm:$0xf]
  %v65 = vld [vmem:[%s2 + $0xc] sm:$0xf]
  %v66 = vld [vmem:[%s2 + $0x10] sm:$0xf]
  %v67 = vld [vmem:[%s2 + $0x14] sm:$0xf]
  %v68 = vld [vmem:[%s2 + $0x18] sm:$0xf]
  %v69 = vld [vmem:[%s2 + $0x1c] sm:$0xf]
  %v70 = vld [vmem:[%s2 + $0x20] sm:$0xf]
  %v71 = vld [vmem:[%s2 + $0x24] sm:$0xf]
  %v72 = vld [vmem:[%s2 + $0x28] sm:$0xf]
  %v73 = vld [vmem:[%s2 + $0x2c] sm:$0xf]
  %v74 = vld [vmem:[%s2 + $0x30] sm:$0xf]
  %v75 = vld [vmem:[%s2 + $0x34] sm:$0xf]
  %v76 = vld [vmem:[%s2 + $0x38] sm:$0xf]
  %v77 = vld [vmem:[%s2 + $0x3c] sm:$0xf]
  %v94 = vunpack.c.l.b16 %v46
  %v95 = vunpack.c.l.b16 %v47
  %v96 = vunpack.c.l.b16 %v48
  %v97 = vunpack.c.l.b16 %v49
  %v98 = vunpack.c.l.b16 %v50
  %v99 = vunpack.c.l.b16 %v51
  %v100 = vunpack.c.l.b16 %v52
  %v101 = vunpack.c.l.b16 %v53
  %v102 = vunpack.c.l.b16 %v54
  %v103 = vunpack.c.l.b16 %v55
  %v104 = vunpack.c.l.b16 %v56
  %v105 = vunpack.c.l.b16 %v57
  %v106 = vunpack.c.l.b16 %v58
  %v107 = vunpack.c.l.b16 %v59
  %v108 = vunpack.c.l.b16 %v60
  %v109 = vunpack.c.l.b16 %v61
  %v110 = vpack.c.b16 %v95, %v94
  %v111 = vpack.c.b16 %v97, %v96
  %v112 = vpack.c.b16 %v99, %v98
  %v113 = vpack.c.b16 %v101, %v100
  %v114 = vpack.c.b16 %v103, %v102
  %v115 = vpack.c.b16 %v105, %v104
  %v116 = vpack.c.b16 %v107, %v106
  %v117 = vpack.c.b16 %v109, %v108
  %v142 = vunpack.c.l.b16 %v62
  %v143 = vunpack.c.l.b16 %v63
  %v144 = vunpack.c.l.b16 %v64
  %v145 = vunpack.c.l.b16 %v65
  %v146 = vunpack.c.l.b16 %v66
  %v147 = vunpack.c.l.b16 %v67
  %v148 = vunpack.c.l.b16 %v68
  %v149 = vunpack.c.l.b16 %v69
  %v150 = vunpack.c.l.b16 %v70
  %v151 = vunpack.c.l.b16 %v71
  %v152 = vunpack.c.l.b16 %v72
  %v153 = vunpack.c.l.b16 %v73
  %v154 = vunpack.c.l.b16 %v74
  %v155 = vunpack.c.l.b16 %v75
  %v156 = vunpack.c.l.b16 %v76
  %v157 = vunpack.c.l.b16 %v77
  %v158 = vpack.c.b16 %v143, %v142
  %v159 = vpack.c.b16 %v145, %v144
  %v160 = vpack.c.b16 %v147, %v146
  %v161 = vpack.c.b16 %v149, %v148
  %v162 = vpack.c.b16 %v151, %v150
  %v163 = vpack.c.b16 %v153, %v152
  %v164 = vpack.c.b16 %v155, %v154
  %v165 = vpack.c.b16 %v157, %v156
  %174 = vmatprep.subr.bf16.mxu0 0
  %175 = vmatpush1.bf16.msra.mxu0 %v158
  %176 = vmatprep.subr.bf16.mxu0 0
  %177 = vmatpush1.bf16.msra.mxu0 %v159
  %178 = vmatprep.subr.bf16.mxu0 0
  %179 = vmatpush1.bf16.msra.mxu0 %v160
  %180 = vmatprep.subr.bf16.mxu0 0
  %181 = vmatpush1.bf16.msra.mxu0 %v161
  %182 = vmatprep.subr.bf16.mxu0 0
  %183 = vmatpush1.bf16.msra.mxu0 %v162
  %184 = vmatprep.subr.bf16.mxu0 0
  %185 = vmatpush1.bf16.msra.mxu0 %v163
  %186 = vmatprep.subr.bf16.mxu0 0
  %187 = vmatpush1.bf16.msra.mxu0 %v164
  %188 = vmatprep.subr.bf16.mxu0 0
  %189 = vmatpush1.bf16.msra.mxu0 %v165
  %190 = vmatprep.subr.bf16.mxu0 0
  %191 = vmatpush1.bf16.msra.mxu0 0
  %192 = vmatprep.subr.bf16.mxu0 0
  %193 = vmatpush1.bf16.msra.mxu0 0
  %194 = vmatprep.subr.bf16.mxu0 0
  %195 = vmatpush1.bf16.msra.mxu0 0
  %196 = vmatprep.subr.bf16.mxu0 0
  %197 = vmatpush1.bf16.msra.mxu0 0
  %198 = vmatprep.subr.bf16.mxu0 0
  %199 = vmatpush1.bf16.msra.mxu0 0
  %200 = vmatprep.subr.bf16.mxu0 0
  %201 = vmatpush1.bf16.msra.mxu0 0
  %202 = vmatprep.subr.bf16.mxu0 0
  %203 = vmatpush1.bf16.msra.mxu0 0
  %204 = vmatprep.subr.bf16.mxu0 0
  %205 = vmatpush1.bf16.msra.mxu0 0
  %206 = vmatprep.mubr.bf16.mxu0 0
  %207 = vmatmul.mubr.bf16.gmra.mrb[0].mxu0 %v110
  %v208 = vpop.f32.mrb[0].mxu0
  %v209 = vadd.f32 0.0, %v208
  %v210 = vpop.f32.mrb[0].mxu0
  %v211 = vpop.f32.mrb[0].mxu0
  %v212 = vadd.f32 0.0, %v211
  %v213 = vpop.f32.mrb[0].mxu0
  %214 = vmatprep.mubr.bf16.mxu0 0
  %215 = vmatmul.mubr.bf16.gmra.mrb[0].mxu0 %v111
  %v216 = vpop.f32.mrb[0].mxu0
  %v217 = vadd.f32 0.0, %v216
  %v218 = vpop.f32.mrb[0].mxu0
  %v219 = vpop.f32.mrb[0].mxu0
  %v220 = vadd.f32 0.0, %v219
  %v221 = vpop.f32.mrb[0].mxu0
  %222 = vmatprep.mubr.bf16.mxu0 0
  %223 = vmatmul.mubr.bf16.gmra.mrb[0].mxu0 %v112
  %v224 = vpop.f32.mrb[0].mxu0
  %v225 = vadd.f32 0.0, %v224
  %v226 = vpop.f32.mrb[0].mxu0
  %v227 = vpop.f32.mrb[0].mxu0
  %v228 = vadd.f32 0.0, %v227
  %v229 = vpop.f32.mrb[0].mxu0
  %230 = vmatprep.mubr.bf16.mxu0 0
  %231 = vmatmul.mubr.bf16.gmra.mrb[0].mxu0 %v113
  %v232 = vpop.f32.mrb[0].mxu0
  %v233 = vadd.f32 0.0, %v232
  %v234 = vpop.f32.mrb[0].mxu0
  %v235 = vpop.f32.mrb[0].mxu0
  %v236 = vadd.f32 0.0, %v235
  %v237 = vpop.f32.mrb[0].mxu0
  %238 = vmatprep.mubr.bf16.mxu0 0
  %239 = vmatmul.mubr.bf16.gmra.mrb[0].mxu0 %v114
  %v240 = vpop.f32.mrb[0].mxu0
  %v241 = vadd.f32 0.0, %v240
  %v242 = vpop.f32.mrb[0].mxu0
  %v243 = vpop.f32.mrb[0].mxu0
  %v244 = vadd.f32 0.0, %v243
  %v245 = vpop.f32.mrb[0].mxu0
  %246 = vmatprep.mubr.bf16.mxu0 0
  %247 = vmatmul.mubr.bf16.gmra.mrb[0].mxu0 %v115
  %v248 = vpop.f32.mrb[0].mxu0
  %v249 = vadd.f32 0.0, %v248
  %v250 = vpop.f32.mrb[0].mxu0
  %v251 = vpop.f32.mrb[0].mxu0
  %v252 = vadd.f32 0.0, %v251
  %v253 = vpop.f32.mrb[0].mxu0
  %254 = vmatprep.mubr.bf16.mxu0 0
  %255 = vmatmul.mubr.bf16.gmra.mrb[0].mxu0 %v116
  %v256 = vpop.f32.mrb[0].mxu0
  %v257 = vadd.f32 0.0, %v256
  %v258 = vpop.f32.mrb[0].mxu0
  %v259 = vpop.f32.mrb[0].mxu0
  %v260 = vadd.f32 0.0, %v259
  %v261 = vpop.f32.mrb[0].mxu0
  %262 = vmatprep.mubr.bf16.mxu0 0
  %263 = vmatmul.mubr.bf16.gmra.mrb[0].mxu0 %v117
  %v264 = vpop.f32.mrb[0].mxu0
  %v265 = vadd.f32 0.0, %v264
  %v266 = vpop.f32.mrb[0].mxu0
  %v267 = vpop.f32.mrb[0].mxu0
  %v268 = vadd.f32 0.0, %v267
  %v269 = vpop.f32.mrb[0].mxu0
  %270 = vdwg.mxu0
  %v271 = vpack.c.bf16 %v212, %v209
  %v272 = vpack.c.bf16 %v220, %v217
  %v273 = vpack.c.bf16 %v228, %v225
  %v274 = vpack.c.bf16 %v236, %v233
  %v275 = vpack.c.bf16 %v244, %v241
  %v276 = vpack.c.bf16 %v252, %v249
  %v277 = vpack.c.bf16 %v260, %v257
  %v278 = vpack.c.bf16 %v268, %v265
  %v279 = vld [vmem:[%s3] sm:$0x1]
  %v281 = vlaneseq
  %v282 = vshrl.u32 %v281, 7
  %v283 = vsub.s32 0, %v282
  %v284 = vrot.slane %v279, %v283
  %v302 = vunpack.c.l.b16 %v30
  %v303 = vunpack.c.l.b16 %v31
  %v304 = vunpack.c.l.b16 %v32
  %v305 = vunpack.c.l.b16 %v33
  %v306 = vunpack.c.l.b16 %v34
  %v307 = vunpack.c.l.b16 %v35
  %v308 = vunpack.c.l.b16 %v36
  %v309 = vunpack.c.l.b16 %v37
  %v310 = vunpack.c.l.b16 %v38
  %v311 = vunpack.c.l.b16 %v39
  %v312 = vunpack.c.l.b16 %v40
  %v313 = vunpack.c.l.b16 %v41
  %v314 = vunpack.c.l.b16 %v42
  %v315 = vunpack.c.l.b16 %v43
  %v316 = vunpack.c.l.b16 %v44
  %v317 = vunpack.c.l.b16 %v45
  %v318 = vpack.c.b16 %v303, %v302
  %v319 = vpack.c.b16 %v305, %v304
  %v320 = vpack.c.b16 %v307, %v306
  %v321 = vpack.c.b16 %v309, %v308
  %v322 = vpack.c.b16 %v311, %v310
  %v323 = vpack.c.b16 %v313, %v312
  %v324 = vpack.c.b16 %v315, %v314
  %v325 = vpack.c.b16 %v317, %v316
  %334 = vmatprep.subr.bf16.mxu0 0
  %335 = vmatpush1.bf16.msra.mxu0 %v271
  %336 = vmatprep.subr.bf16.mxu0 0
  %337 = vmatpush1.bf16.msra.mxu0 %v272
  %338 = vmatprep.subr.bf16.mxu0 0
  %339 = vmatpush1.bf16.msra.mxu0 %v273
  %340 = vmatprep.subr.bf16.mxu0 0
  %341 = vmatpush1.bf16.msra.mxu0 %v274
  %342 = vmatprep.subr.bf16.mxu0 0
  %343 = vmatpush1.bf16.msra.mxu0 %v275
  %344 = vmatprep.subr.bf16.mxu0 0
  %345 = vmatpush1.bf16.msra.mxu0 %v276
  %346 = vmatprep.subr.bf16.mxu0 0
  %347 = vmatpush1.bf16.msra.mxu0 %v277
  %348 = vmatprep.subr.bf16.mxu0 0
  %349 = vmatpush1.bf16.msra.mxu0 %v278
  %350 = vmatprep.subr.bf16.mxu0 0
  %351 = vmatpush1.bf16.msra.mxu0 0
  %352 = vmatprep.subr.bf16.mxu0 0
  %353 = vmatpush1.bf16.msra.mxu0 0
  %354 = vmatprep.subr.bf16.mxu0 0
  %355 = vmatpush1.bf16.msra.mxu0 0
  %356 = vmatprep.subr.bf16.mxu0 0
  %357 = vmatpush1.bf16.msra.mxu0 0
  %358 = vmatprep.subr.bf16.mxu0 0
  %359 = vmatpush1.bf16.msra.mxu0 0
  %360 = vmatprep.subr.bf16.mxu0 0
  %361 = vmatpush1.bf16.msra.mxu0 0
  %362 = vmatprep.subr.bf16.mxu0 0
  %363 = vmatpush1.bf16.msra.mxu0 0
  %364 = vmatprep.subr.bf16.mxu0 0
  %365 = vmatpush1.bf16.msra.mxu0 0
  %366 = vmatprep.mubr.bf16.mxu0 0
  %367 = vmatmul.mubr.bf16.gmra.mrb[0].mxu0 %v318
  %v368 = vpop.f32.mrb[0].mxu0
  %v369 = vadd.f32 %v284, %v368
  %v370 = vpop.f32.mrb[0].mxu0
  %v371 = vpop.f32.mrb[0].mxu0
  %v372 = vadd.f32 %v284, %v371
  %v373 = vpop.f32.mrb[0].mxu0
  %374 = vmatprep.mubr.bf16.mxu0 0
  %375 = vmatmul.mubr.bf16.gmra.mrb[0].mxu0 %v319
  %v376 = vpop.f32.mrb[0].mxu0
  %v377 = vadd.f32 %v284, %v376
  %v378 = vpop.f32.mrb[0].mxu0
  %v379 = vpop.f32.mrb[0].mxu0
  %v380 = vadd.f32 %v284, %v379
  %v381 = vpop.f32.mrb[0].mxu0
  %382 = vmatprep.mubr.bf16.mxu0 0
  %383 = vmatmul.mubr.bf16.gmra.mrb[0].mxu0 %v320
  %v384 = vpop.f32.mrb[0].mxu0
  %v385 = vadd.f32 %v284, %v384
  %v386 = vpop.f32.mrb[0].mxu0
  %v387 = vpop.f32.mrb[0].mxu0
  %v388 = vadd.f32 %v284, %v387
  %v389 = vpop.f32.mrb[0].mxu0
  %390 = vmatprep.mubr.bf16.mxu0 0
  %391 = vmatmul.mubr.bf16.gmra.mrb[0].mxu0 %v321
  %v392 = vpop.f32.mrb[0].mxu0
  %v393 = vadd.f32 %v284, %v392
  %v394 = vpop.f32.mrb[0].mxu0
  %v395 = vpop.f32.mrb[0].mxu0
  %v396 = vadd.f32 %v284, %v395
  %v397 = vpop.f32.mrb[0].mxu0
  %398 = vmatprep.mubr.bf16.mxu0 0
  %399 = vmatmul.mubr.bf16.gmra.mrb[0].mxu0 %v322
  %v400 = vpop.f32.mrb[0].mxu0
  %v401 = vadd.f32 %v284, %v400
  %v402 = vpop.f32.mrb[0].mxu0
  %v403 = vpop.f32.mrb[0].mxu0
  %v404 = vadd.f32 %v284, %v403
  %v405 = vpop.f32.mrb[0].mxu0
  %406 = vmatprep.mubr.bf16.mxu0 0
  %407 = vmatmul.mubr.bf16.gmra.mrb[0].mxu0 %v323
  %v408 = vpop.f32.mrb[0].mxu0
  %v409 = vadd.f32 %v284, %v408
  %v410 = vpop.f32.mrb[0].mxu0
  %v411 = vpop.f32.mrb[0].mxu0
  %v412 = vadd.f32 %v284, %v411
  %v413 = vpop.f32.mrb[0].mxu0
  %414 = vmatprep.mubr.bf16.mxu0 0
  %415 = vmatmul.mubr.bf16.gmra.mrb[0].mxu0 %v324
  %v416 = vpop.f32.mrb[0].mxu0
  %v417 = vadd.f32 %v284, %v416
  %v418 = vpop.f32.mrb[0].mxu0
  %v419 = vpop.f32.mrb[0].mxu0
  %v420 = vadd.f32 %v284, %v419
  %v421 = vpop.f32.mrb[0].mxu0
  %422 = vmatprep.mubr.bf16.mxu0 0
  %423 = vmatmul.mubr.bf16.gmra.mrb[0].mxu0 %v325
  %v424 = vpop.f32.mrb[0].mxu0
  %v425 = vadd.f32 %v284, %v424
  %v426 = vpop.f32.mrb[0].mxu0
  %v427 = vpop.f32.mrb[0].mxu0
  %v428 = vadd.f32 %v284, %v427
  %v429 = vpop.f32.mrb[0].mxu0
  %430 = vdwg.mxu0
  %v431 = vmax.f32 %v369, 0.0
  %v432 = vmax.f32 %v372, 0.0
  %v433 = vmax.f32 %v377, 0.0
  %v434 = vmax.f32 %v380, 0.0
  %v435 = vmax.f32 %v385, 0.0
  %v436 = vmax.f32 %v388, 0.0
  %v437 = vmax.f32 %v393, 0.0
  %v438 = vmax.f32 %v396, 0.0
  %v439 = vmax.f32 %v401, 0.0
  %v440 = vmax.f32 %v404, 0.0
  %v441 = vmax.f32 %v409, 0.0
  %v442 = vmax.f32 %v412, 0.0
  %v443 = vmax.f32 %v417, 0.0
  %v444 = vmax.f32 %v420, 0.0
  %v445 = vmax.f32 %v425, 0.0
  %v446 = vmax.f32 %v428, 0.0
  %v447 = vpack.c.bf16 %v432, %v431
  %v448 = vpack.c.bf16 %v434, %v433
  %v449 = vpack.c.bf16 %v436, %v435
  %v450 = vpack.c.bf16 %v438, %v437
  %v451 = vpack.c.bf16 %v440, %v439
  %v452 = vpack.c.bf16 %v442, %v441
  %v453 = vpack.c.bf16 %v444, %v443
  %v454 = vpack.c.bf16 %v446, %v445
  %v455 = vld [vmem:[%s4] sm:$0xf]
  %v456 = vld [vmem:[%s4 + $0x4] sm:$0xf]
  %v457 = vld [vmem:[%s4 + $0x8] sm:$0xf]
  %v458 = vld [vmem:[%s4 + $0xc] sm:$0xf]
  %v459 = vld [vmem:[%s4 + $0x10] sm:$0xf]
  %v460 = vld [vmem:[%s4 + $0x14] sm:$0xf]
  %v461 = vld [vmem:[%s4 + $0x18] sm:$0xf]
  %v462 = vld [vmem:[%s4 + $0x1c] sm:$0xf]
  %v463 = vld [vmem:[%s4 + $0x20] sm:$0xf]
  %v464 = vld [vmem:[%s4 + $0x24] sm:$0xf]
  %v465 = vld [vmem:[%s4 + $0x28] sm:$0xf]
  %v466 = vld [vmem:[%s4 + $0x2c] sm:$0xf]
  %v467 = vld [vmem:[%s4 + $0x30] sm:$0xf]
  %v468 = vld [vmem:[%s4 + $0x34] sm:$0xf]
  %v469 = vld [vmem:[%s4 + $0x38] sm:$0xf]
  %v470 = vld [vmem:[%s4 + $0x3c] sm:$0xf]
  %v487 = vunpack.c.l.b16 %v455
  %v488 = vunpack.c.l.b16 %v456
  %v489 = vunpack.c.l.b16 %v457
  %v490 = vunpack.c.l.b16 %v458
  %v491 = vunpack.c.l.b16 %v459
  %v492 = vunpack.c.l.b16 %v460
  %v493 = vunpack.c.l.b16 %v461
  %v494 = vunpack.c.l.b16 %v462
  %v495 = vunpack.c.l.b16 %v463
  %v496 = vunpack.c.l.b16 %v464
  %v497 = vunpack.c.l.b16 %v465
  %v498 = vunpack.c.l.b16 %v466
  %v499 = vunpack.c.l.b16 %v467
  %v500 = vunpack.c.l.b16 %v468
  %v501 = vunpack.c.l.b16 %v469
  %v502 = vunpack.c.l.b16 %v470
  %v503 = vpack.c.b16 %v488, %v487
  %v504 = vpack.c.b16 %v490, %v489
  %v505 = vpack.c.b16 %v492, %v491
  %v506 = vpack.c.b16 %v494, %v493
  %v507 = vpack.c.b16 %v496, %v495
  %v508 = vpack.c.b16 %v498, %v497
  %v509 = vpack.c.b16 %v500, %v499
  %v510 = vpack.c.b16 %v502, %v501
  %519 = vmatprep.subr.bf16.mxu0 0
  %520 = vmatpush1.bf16.msra.mxu0 %v503
  %521 = vmatprep.subr.bf16.mxu0 0
  %522 = vmatpush1.bf16.msra.mxu0 %v504
  %523 = vmatprep.subr.bf16.mxu0 0
  %524 = vmatpush1.bf16.msra.mxu0 %v505
  %525 = vmatprep.subr.bf16.mxu0 0
  %526 = vmatpush1.bf16.msra.mxu0 %v506
  %527 = vmatprep.subr.bf16.mxu0 0
  %528 = vmatpush1.bf16.msra.mxu0 %v507
  %529 = vmatprep.subr.bf16.mxu0 0
  %530 = vmatpush1.bf16.msra.mxu0 %v508
  %531 = vmatprep.subr.bf16.mxu0 0
  %532 = vmatpush1.bf16.msra.mxu0 %v509
  %533 = vmatprep.subr.bf16.mxu0 0
  %534 = vmatpush1.bf16.msra.mxu0 %v510
  %535 = vmatprep.subr.bf16.mxu0 0
  %536 = vmatpush1.bf16.msra.mxu0 0
  %537 = vmatprep.subr.bf16.mxu0 0
  %538 = vmatpush1.bf16.msra.mxu0 0
  %539 = vmatprep.subr.bf16.mxu0 0
  %540 = vmatpush1.bf16.msra.mxu0 0
  %541 = vmatprep.subr.bf16.mxu0 0
  %542 = vmatpush1.bf16.msra.mxu0 0
  %543 = vmatprep.subr.bf16.mxu0 0
  %544 = vmatpush1.bf16.msra.mxu0 0
  %545 = vmatprep.subr.bf16.mxu0 0
  %546 = vmatpush1.bf16.msra.mxu0 0
  %547 = vmatprep.subr.bf16.mxu0 0
  %548 = vmatpush1.bf16.msra.mxu0 0
  %549 = vmatprep.subr.bf16.mxu0 0
  %550 = vmatpush1.bf16.msra.mxu0 0
  %551 = vmatprep.mubr.bf16.mxu0 0
  %552 = vmatmul.mubr.bf16.gmra.mrb[0].mxu0 %v447
  %v553 = vpop.f32.mrb[0].mxu0
  %v554 = vadd.f32 0.0, %v553
  %v555 = vpop.f32.mrb[0].mxu0
  %v556 = vpop.f32.mrb[0].mxu0
  %v557 = vadd.f32 0.0, %v556
  %v558 = vpop.f32.mrb[0].mxu0
  %559 = vmatprep.mubr.bf16.mxu0 0
  %560 = vmatmul.mubr.bf16.gmra.mrb[0].mxu0 %v448
  %v561 = vpop.f32.mrb[0].mxu0
  %v562 = vadd.f32 0.0, %v561
  %v563 = vpop.f32.mrb[0].mxu0
  %v564 = vpop.f32.mrb[0].mxu0
  %v565 = vadd.f32 0.0, %v564
  %v566 = vpop.f32.mrb[0].mxu0
  %567 = vmatprep.mubr.bf16.mxu0 0
  %568 = vmatmul.mubr.bf16.gmra.mrb[0].mxu0 %v449
  %v569 = vpop.f32.mrb[0].mxu0
  %v570 = vadd.f32 0.0, %v569
  %v571 = vpop.f32.mrb[0].mxu0
  %v572 = vpop.f32.mrb[0].mxu0
  %v573 = vadd.f32 0.0, %v572
  %v574 = vpop.f32.mrb[0].mxu0
  %575 = vmatprep.mubr.bf16.mxu0 0
  %576 = vmatmul.mubr.bf16.gmra.mrb[0].mxu0 %v450
  %v577 = vpop.f32.mrb[0].mxu0
  %v578 = vadd.f32 0.0, %v577
  %v579 = vpop.f32.mrb[0].mxu0
  %v580 = vpop.f32.mrb[0].mxu0
  %v581 = vadd.f32 0.0, %v580
  %v582 = vpop.f32.mrb[0].mxu0
  %583 = vmatprep.mubr.bf16.mxu0 0
  %584 = vmatmul.mubr.bf16.gmra.mrb[0].mxu0 %v451
  %v585 = vpop.f32.mrb[0].mxu0
  %v586 = vadd.f32 0.0, %v585
  %v587 = vpop.f32.mrb[0].mxu0
  %v588 = vpop.f32.mrb[0].mxu0
  %v589 = vadd.f32 0.0, %v588
  %v590 = vpop.f32.mrb[0].mxu0
  %591 = vmatprep.mubr.bf16.mxu0 0
  %592 = vmatmul.mubr.bf16.gmra.mrb[0].mxu0 %v452
  %v593 = vpop.f32.mrb[0].mxu0
  %v594 = vadd.f32 0.0, %v593
  %v595 = vpop.f32.mrb[0].mxu0
  %v596 = vpop.f32.mrb[0].mxu0
  %v597 = vadd.f32 0.0, %v596
  %v598 = vpop.f32.mrb[0].mxu0
  %599 = vmatprep.mubr.bf16.mxu0 0
  %600 = vmatmul.mubr.bf16.gmra.mrb[0].mxu0 %v453
  %v601 = vpop.f32.mrb[0].mxu0
  %v602 = vadd.f32 0.0, %v601
  %v603 = vpop.f32.mrb[0].mxu0
  %v604 = vpop.f32.mrb[0].mxu0
  %v605 = vadd.f32 0.0, %v604
  %v606 = vpop.f32.mrb[0].mxu0
  %607 = vmatprep.mubr.bf16.mxu0 0
  %608 = vmatmul.mubr.bf16.gmra.mrb[0].mxu0 %v454
  %v609 = vpop.f32.mrb[0].mxu0
  %v610 = vadd.f32 0.0, %v609
  %v611 = vpop.f32.mrb[0].mxu0
  %v612 = vpop.f32.mrb[0].mxu0
  %v613 = vadd.f32 0.0, %v612
  %v614 = vpop.f32.mrb[0].mxu0
  %615 = vdwg.mxu0
  %v616 = vpack.c.bf16 %v557, %v554
  %v617 = vpack.c.bf16 %v565, %v562
  %v618 = vpack.c.bf16 %v573, %v570
  %v619 = vpack.c.bf16 %v581, %v578
  %v620 = vpack.c.bf16 %v589, %v586
  %v621 = vpack.c.bf16 %v597, %v594
  %v622 = vpack.c.bf16 %v605, %v602
  %v623 = vpack.c.bf16 %v613, %v610
  %v624 = vld [vmem:[%s5] sm:$0x1]
  %v626 = vlaneseq
  %v627 = vshrl.u32 %v626, 7
  %v628 = vsub.s32 0, %v627
  %v629 = vrot.slane %v624, %v628
  %631 = vmatprep.subr.bf16.mxu0 0
  %632 = vmatpush1.bf16.msra.mxu0 %v616
  %633 = vmatprep.subr.bf16.mxu0 0
  %634 = vmatpush1.bf16.msra.mxu0 %v617
  %635 = vmatprep.subr.bf16.mxu0 0
  %636 = vmatpush1.bf16.msra.mxu0 %v618
  %637 = vmatprep.subr.bf16.mxu0 0
  %638 = vmatpush1.bf16.msra.mxu0 %v619
  %639 = vmatprep.subr.bf16.mxu0 0
  %640 = vmatpush1.bf16.msra.mxu0 %v620
  %641 = vmatprep.subr.bf16.mxu0 0
  %642 = vmatpush1.bf16.msra.mxu0 %v621
  %643 = vmatprep.subr.bf16.mxu0 0
  %644 = vmatpush1.bf16.msra.mxu0 %v622
  %645 = vmatprep.subr.bf16.mxu0 0
  %646 = vmatpush1.bf16.msra.mxu0 %v623
  %647 = vmatprep.subr.bf16.mxu0 0
  %648 = vmatpush1.bf16.msra.mxu0 0
  %649 = vmatprep.subr.bf16.mxu0 0
  %650 = vmatpush1.bf16.msra.mxu0 0
  %651 = vmatprep.subr.bf16.mxu0 0
  %652 = vmatpush1.bf16.msra.mxu0 0
  %653 = vmatprep.subr.bf16.mxu0 0
  %654 = vmatpush1.bf16.msra.mxu0 0
  %655 = vmatprep.subr.bf16.mxu0 0
  %656 = vmatpush1.bf16.msra.mxu0 0
  %657 = vmatprep.subr.bf16.mxu0 0
  %658 = vmatpush1.bf16.msra.mxu0 0
  %659 = vmatprep.subr.bf16.mxu0 0
  %660 = vmatpush1.bf16.msra.mxu0 0
  %661 = vmatprep.subr.bf16.mxu0 0
  %662 = vmatpush1.bf16.msra.mxu0 0
  %663 = vmatprep.mubr.bf16.mxu0 0
  %664 = vmatmul.mubr.bf16.gmra.mrb[0].mxu0 %v318
  %v665 = vpop.f32.mrb[0].mxu0
  %v666 = vadd.f32 %v629, %v665
  %v667 = vpop.f32.mrb[0].mxu0
  %v668 = vpop.f32.mrb[0].mxu0
  %v669 = vadd.f32 %v629, %v668
  %v670 = vpop.f32.mrb[0].mxu0
  %671 = vmatprep.mubr.bf16.mxu0 0
  %672 = vmatmul.mubr.bf16.gmra.mrb[0].mxu0 %v319
  %v673 = vpop.f32.mrb[0].mxu0
  %v674 = vadd.f32 %v629, %v673
  %v675 = vpop.f32.mrb[0].mxu0
  %v676 = vpop.f32.mrb[0].mxu0
  %v677 = vadd.f32 %v629, %v676
  %v678 = vpop.f32.mrb[0].mxu0
  %679 = vmatprep.mubr.bf16.mxu0 0
  %680 = vmatmul.mubr.bf16.gmra.mrb[0].mxu0 %v320
  %v681 = vpop.f32.mrb[0].mxu0
  %v682 = vadd.f32 %v629, %v681
  %v683 = vpop.f32.mrb[0].mxu0
  %v684 = vpop.f32.mrb[0].mxu0
  %v685 = vadd.f32 %v629, %v684
  %v686 = vpop.f32.mrb[0].mxu0
  %687 = vmatprep.mubr.bf16.mxu0 0
  %688 = vmatmul.mubr.bf16.gmra.mrb[0].mxu0 %v321
  %v689 = vpop.f32.mrb[0].mxu0
  %v690 = vadd.f32 %v629, %v689
  %v691 = vpop.f32.mrb[0].mxu0
  %v692 = vpop.f32.mrb[0].mxu0
  %v693 = vadd.f32 %v629, %v692
  %v694 = vpop.f32.mrb[0].mxu0
  %695 = vmatprep.mubr.bf16.mxu0 0
  %696 = vmatmul.mubr.bf16.gmra.mrb[0].mxu0 %v322
  %v697 = vpop.f32.mrb[0].mxu0
  %v698 = vadd.f32 %v629, %v697
  %v699 = vpop.f32.mrb[0].mxu0
  %v700 = vpop.f32.mrb[0].mxu0
  %v701 = vadd.f32 %v629, %v700
  %v702 = vpop.f32.mrb[0].mxu0
  %703 = vmatprep.mubr.bf16.mxu0 0
  %704 = vmatmul.mubr.bf16.gmra.mrb[0].mxu0 %v323
  %v705 = vpop.f32.mrb[0].mxu0
  %v706 = vadd.f32 %v629, %v705
  %v707 = vpop.f32.mrb[0].mxu0
  %v708 = vpop.f32.mrb[0].mxu0
  %v709 = vadd.f32 %v629, %v708
  %v710 = vpop.f32.mrb[0].mxu0
  %711 = vmatprep.mubr.bf16.mxu0 0
  %712 = vmatmul.mubr.bf16.gmra.mrb[0].mxu0 %v324
  %v713 = vpop.f32.mrb[0].mxu0
  %v714 = vadd.f32 %v629, %v713
  %v715 = vpop.f32.mrb[0].mxu0
  %v716 = vpop.f32.mrb[0].mxu0
  %v717 = vadd.f32 %v629, %v716
  %v718 = vpop.f32.mrb[0].mxu0
  %719 = vmatprep.mubr.bf16.mxu0 0
  %720 = vmatmul.mubr.bf16.gmra.mrb[0].mxu0 %v325
  %v721 = vpop.f32.mrb[0].mxu0
  %v722 = vadd.f32 %v629, %v721
  %v723 = vpop.f32.mrb[0].mxu0
  %v724 = vpop.f32.mrb[0].mxu0
  %v725 = vadd.f32 %v629, %v724
  %v726 = vpop.f32.mrb[0].mxu0
  %727 = vdwg.mxu0
  %v728 = vmax.f32 %v666, 0.0
  %v729 = vmax.f32 %v669, 0.0
  %v730 = vmax.f32 %v674, 0.0
  %v731 = vmax.f32 %v677, 0.0
  %v732 = vmax.f32 %v682, 0.0
  %v733 = vmax.f32 %v685, 0.0
  %v734 = vmax.f32 %v690, 0.0
  %v735 = vmax.f32 %v693, 0.0
  %v736 = vmax.f32 %v698, 0.0
  %v737 = vmax.f32 %v701, 0.0
  %v738 = vmax.f32 %v706, 0.0
  %v739 = vmax.f32 %v709, 0.0
  %v740 = vmax.f32 %v714, 0.0
  %v741 = vmax.f32 %v717, 0.0
  %v742 = vmax.f32 %v722, 0.0
  %v743 = vmax.f32 %v725, 0.0
  %v744 = vpack.c.bf16 %v729, %v728
  %v745 = vpack.c.bf16 %v731, %v730
  %v746 = vpack.c.bf16 %v733, %v732
  %v747 = vpack.c.bf16 %v735, %v734
  %v748 = vpack.c.bf16 %v737, %v736
  %v749 = vpack.c.bf16 %v739, %v738
  %v750 = vpack.c.bf16 %v741, %v740
  %v751 = vpack.c.bf16 %v743, %v742
  %v752 = vld [vmem:[%s6] sm:$0xf]
  %v753 = vld [vmem:[%s6 + $0x4] sm:$0xf]
  %v754 = vld [vmem:[%s6 + $0x8] sm:$0xf]
  %v755 = vld [vmem:[%s6 + $0xc] sm:$0xf]
  %v756 = vld [vmem:[%s6 + $0x10] sm:$0xf]
  %v757 = vld [vmem:[%s6 + $0x14] sm:$0xf]
  %v758 = vld [vmem:[%s6 + $0x18] sm:$0xf]
  %v759 = vld [vmem:[%s6 + $0x1c] sm:$0xf]
  %v760 = vld [vmem:[%s6 + $0x20] sm:$0xf]
  %v761 = vld [vmem:[%s6 + $0x24] sm:$0xf]
  %v762 = vld [vmem:[%s6 + $0x28] sm:$0xf]
  %v763 = vld [vmem:[%s6 + $0x2c] sm:$0xf]
  %v764 = vld [vmem:[%s6 + $0x30] sm:$0xf]
  %v765 = vld [vmem:[%s6 + $0x34] sm:$0xf]
  %v766 = vld [vmem:[%s6 + $0x38] sm:$0xf]
  %v767 = vld [vmem:[%s6 + $0x3c] sm:$0xf]
  %v784 = vunpack.c.l.b16 %v752
  %v785 = vunpack.c.l.b16 %v753
  %v786 = vunpack.c.l.b16 %v754
  %v787 = vunpack.c.l.b16 %v755
  %v788 = vunpack.c.l.b16 %v756
  %v789 = vunpack.c.l.b16 %v757
  %v790 = vunpack.c.l.b16 %v758
  %v791 = vunpack.c.l.b16 %v759
  %v792 = vunpack.c.l.b16 %v760
  %v793 = vunpack.c.l.b16 %v761
  %v794 = vunpack.c.l.b16 %v762
  %v795 = vunpack.c.l.b16 %v763
  %v796 = vunpack.c.l.b16 %v764
  %v797 = vunpack.c.l.b16 %v765
  %v798 = vunpack.c.l.b16 %v766
  %v799 = vunpack.c.l.b16 %v767
  %v800 = vpack.c.b16 %v785, %v784
  %v801 = vpack.c.b16 %v787, %v786
  %v802 = vpack.c.b16 %v789, %v788
  %v803 = vpack.c.b16 %v791, %v790
  %v804 = vpack.c.b16 %v793, %v792
  %v805 = vpack.c.b16 %v795, %v794
  %v806 = vpack.c.b16 %v797, %v796
  %v807 = vpack.c.b16 %v799, %v798
  %816 = vmatprep.subr.bf16.mxu0 0
  %817 = vmatpush1.bf16.msra.mxu0 %v800
  %818 = vmatprep.subr.bf16.mxu0 0
  %819 = vmatpush1.bf16.msra.mxu0 %v801
  %820 = vmatprep.subr.bf16.mxu0 0
  %821 = vmatpush1.bf16.msra.mxu0 %v802
  %822 = vmatprep.subr.bf16.mxu0 0
  %823 = vmatpush1.bf16.msra.mxu0 %v803
  %824 = vmatprep.subr.bf16.mxu0 0
  %825 = vmatpush1.bf16.msra.mxu0 %v804
  %826 = vmatprep.subr.bf16.mxu0 0
  %827 = vmatpush1.bf16.msra.mxu0 %v805
  %828 = vmatprep.subr.bf16.mxu0 0
  %829 = vmatpush1.bf16.msra.mxu0 %v806
  %830 = vmatprep.subr.bf16.mxu0 0
  %831 = vmatpush1.bf16.msra.mxu0 %v807
  %832 = vmatprep.subr.bf16.mxu0 0
  %833 = vmatpush1.bf16.msra.mxu0 0
  %834 = vmatprep.subr.bf16.mxu0 0
  %835 = vmatpush1.bf16.msra.mxu0 0
  %836 = vmatprep.subr.bf16.mxu0 0
  %837 = vmatpush1.bf16.msra.mxu0 0
  %838 = vmatprep.subr.bf16.mxu0 0
  %839 = vmatpush1.bf16.msra.mxu0 0
  %840 = vmatprep.subr.bf16.mxu0 0
  %841 = vmatpush1.bf16.msra.mxu0 0
  %842 = vmatprep.subr.bf16.mxu0 0
  %843 = vmatpush1.bf16.msra.mxu0 0
  %844 = vmatprep.subr.bf16.mxu0 0
  %845 = vmatpush1.bf16.msra.mxu0 0
  %846 = vmatprep.subr.bf16.mxu0 0
  %847 = vmatpush1.bf16.msra.mxu0 0
  %848 = vmatprep.mubr.bf16.mxu0 0
  %849 = vmatmul.mubr.bf16.gmra.mrb[0].mxu0 %v744
  %v850 = vpop.f32.mrb[0].mxu0
  %v851 = vadd.f32 0.0, %v850
  %v852 = vpop.f32.mrb[0].mxu0
  %v853 = vpop.f32.mrb[0].mxu0
  %v854 = vadd.f32 0.0, %v853
  %v855 = vpop.f32.mrb[0].mxu0
  %856 = vmatprep.mubr.bf16.mxu0 0
  %857 = vmatmul.mubr.bf16.gmra.mrb[0].mxu0 %v745
  %v858 = vpop.f32.mrb[0].mxu0
  %v859 = vadd.f32 0.0, %v858
  %v860 = vpop.f32.mrb[0].mxu0
  %v861 = vpop.f32.mrb[0].mxu0
  %v862 = vadd.f32 0.0, %v861
  %v863 = vpop.f32.mrb[0].mxu0
  %864 = vmatprep.mubr.bf16.mxu0 0
  %865 = vmatmul.mubr.bf16.gmra.mrb[0].mxu0 %v746
  %v866 = vpop.f32.mrb[0].mxu0
  %v867 = vadd.f32 0.0, %v866
  %v868 = vpop.f32.mrb[0].mxu0
  %v869 = vpop.f32.mrb[0].mxu0
  %v870 = vadd.f32 0.0, %v869
  %v871 = vpop.f32.mrb[0].mxu0
  %872 = vmatprep.mubr.bf16.mxu0 0
  %873 = vmatmul.mubr.bf16.gmra.mrb[0].mxu0 %v747
  %v874 = vpop.f32.mrb[0].mxu0
  %v875 = vadd.f32 0.0, %v874
  %v876 = vpop.f32.mrb[0].mxu0
  %v877 = vpop.f32.mrb[0].mxu0
  %v878 = vadd.f32 0.0, %v877
  %v879 = vpop.f32.mrb[0].mxu0
  %880 = vmatprep.mubr.bf16.mxu0 0
  %881 = vmatmul.mubr.bf16.gmra.mrb[0].mxu0 %v748
  %v882 = vpop.f32.mrb[0].mxu0
  %v883 = vadd.f32 0.0, %v882
  %v884 = vpop.f32.mrb[0].mxu0
  %v885 = vpop.f32.mrb[0].mxu0
  %v886 = vadd.f32 0.0, %v885
  %v887 = vpop.f32.mrb[0].mxu0
  %888 = vmatprep.mubr.bf16.mxu0 0
  %889 = vmatmul.mubr.bf16.gmra.mrb[0].mxu0 %v749
  %v890 = vpop.f32.mrb[0].mxu0
  %v891 = vadd.f32 0.0, %v890
  %v892 = vpop.f32.mrb[0].mxu0
  %v893 = vpop.f32.mrb[0].mxu0
  %v894 = vadd.f32 0.0, %v893
  %v895 = vpop.f32.mrb[0].mxu0
  %896 = vmatprep.mubr.bf16.mxu0 0
  %897 = vmatmul.mubr.bf16.gmra.mrb[0].mxu0 %v750
  %v898 = vpop.f32.mrb[0].mxu0
  %v899 = vadd.f32 0.0, %v898
  %v900 = vpop.f32.mrb[0].mxu0
  %v901 = vpop.f32.mrb[0].mxu0
  %v902 = vadd.f32 0.0, %v901
  %v903 = vpop.f32.mrb[0].mxu0
  %904 = vmatprep.mubr.bf16.mxu0 0
  %905 = vmatmul.mubr.bf16.gmra.mrb[0].mxu0 %v751
  %v906 = vpop.f32.mrb[0].mxu0
  %v907 = vadd.f32 0.0, %v906
  %v908 = vpop.f32.mrb[0].mxu0
  %v909 = vpop.f32.mrb[0].mxu0
  %v910 = vadd.f32 0.0, %v909
  %v911 = vpop.f32.mrb[0].mxu0
  %912 = vdwg.mxu0
  %v913 = vpack.c.bf16 %v854, %v851
  %v914 = vpack.c.bf16 %v862, %v859
  %v915 = vpack.c.bf16 %v870, %v867
  %v916 = vpack.c.bf16 %v878, %v875
  %v917 = vpack.c.bf16 %v886, %v883
  %v918 = vpack.c.bf16 %v894, %v891
  %v919 = vpack.c.bf16 %v902, %v899
  %v920 = vpack.c.bf16 %v910, %v907
  %v921 = vld [vmem:[%s7] sm:$0x1]
  %v923 = vlaneseq
  %v924 = vshrl.u32 %v923, 7
  %v925 = vsub.s32 0, %v924
  %v926 = vrot.slane %v921, %v925
  %928 = vmatprep.subr.bf16.mxu0 0
  %929 = vmatpush1.bf16.msra.mxu0 %v913
  %930 = vmatprep.subr.bf16.mxu0 0
  %931 = vmatpush1.bf16.msra.mxu0 %v914
  %932 = vmatprep.subr.bf16.mxu0 0
  %933 = vmatpush1.bf16.msra.mxu0 %v915
  %934 = vmatprep.subr.bf16.mxu0 0
  %935 = vmatpush1.bf16.msra.mxu0 %v916
  %936 = vmatprep.subr.bf16.mxu0 0
  %937 = vmatpush1.bf16.msra.mxu0 %v917
  %938 = vmatprep.subr.bf16.mxu0 0
  %939 = vmatpush1.bf16.msra.mxu0 %v918
  %940 = vmatprep.subr.bf16.mxu0 0
  %941 = vmatpush1.bf16.msra.mxu0 %v919
  %942 = vmatprep.subr.bf16.mxu0 0
  %943 = vmatpush1.bf16.msra.mxu0 %v920
  %944 = vmatprep.subr.bf16.mxu0 0
  %945 = vmatpush1.bf16.msra.mxu0 0
  %946 = vmatprep.subr.bf16.mxu0 0
  %947 = vmatpush1.bf16.msra.mxu0 0
  %948 = vmatprep.subr.bf16.mxu0 0
  %949 = vmatpush1.bf16.msra.mxu0 0
  %950 = vmatprep.subr.bf16.mxu0 0
  %951 = vmatpush1.bf16.msra.mxu0 0
  %952 = vmatprep.subr.bf16.mxu0 0
  %953 = vmatpush1.bf16.msra.mxu0 0
  %954 = vmatprep.subr.bf16.mxu0 0
  %955 = vmatpush1.bf16.msra.mxu0 0
  %956 = vmatprep.subr.bf16.mxu0 0
  %957 = vmatpush1.bf16.msra.mxu0 0
  %958 = vmatprep.subr.bf16.mxu0 0
  %959 = vmatpush1.bf16.msra.mxu0 0
  %960 = vmatprep.mubr.bf16.mxu0 0
  %961 = vmatmul.mubr.bf16.gmra.mrb[0].mxu0 %v318
  %v962 = vpop.f32.mrb[0].mxu0
  %v963 = vadd.f32 %v926, %v962
  %v964 = vpop.f32.mrb[0].mxu0
  %v965 = vpop.f32.mrb[0].mxu0
  %v966 = vadd.f32 %v926, %v965
  %v967 = vpop.f32.mrb[0].mxu0
  %968 = vmatprep.mubr.bf16.mxu0 0
  %969 = vmatmul.mubr.bf16.gmra.mrb[0].mxu0 %v319
  %v970 = vpop.f32.mrb[0].mxu0
  %v971 = vadd.f32 %v926, %v970
  %v972 = vpop.f32.mrb[0].mxu0
  %v973 = vpop.f32.mrb[0].mxu0
  %v974 = vadd.f32 %v926, %v973
  %v975 = vpop.f32.mrb[0].mxu0
  %976 = vmatprep.mubr.bf16.mxu0 0
  %977 = vmatmul.mubr.bf16.gmra.mrb[0].mxu0 %v320
  %v978 = vpop.f32.mrb[0].mxu0
  %v979 = vadd.f32 %v926, %v978
  %v980 = vpop.f32.mrb[0].mxu0
  %v981 = vpop.f32.mrb[0].mxu0
  %v982 = vadd.f32 %v926, %v981
  %v983 = vpop.f32.mrb[0].mxu0
  %984 = vmatprep.mubr.bf16.mxu0 0
  %985 = vmatmul.mubr.bf16.gmra.mrb[0].mxu0 %v321
  %v986 = vpop.f32.mrb[0].mxu0
  %v987 = vadd.f32 %v926, %v986
  %v988 = vpop.f32.mrb[0].mxu0
  %v989 = vpop.f32.mrb[0].mxu0
  %v990 = vadd.f32 %v926, %v989
  %v991 = vpop.f32.mrb[0].mxu0
  %992 = vmatprep.mubr.bf16.mxu0 0
  %993 = vmatmul.mubr.bf16.gmra.mrb[0].mxu0 %v322
  %v994 = vpop.f32.mrb[0].mxu0
  %v995 = vadd.f32 %v926, %v994
  %v996 = vpop.f32.mrb[0].mxu0
  %v997 = vpop.f32.mrb[0].mxu0
  %v998 = vadd.f32 %v926, %v997
  %v999 = vpop.f32.mrb[0].mxu0
  %1000 = vmatprep.mubr.bf16.mxu0 0
  %1001 = vmatmul.mubr.bf16.gmra.mrb[0].mxu0 %v323
  %v1002 = vpop.f32.mrb[0].mxu0
  %v1003 = vadd.f32 %v926, %v1002
  %v1004 = vpop.f32.mrb[0].mxu0
  %v1005 = vpop.f32.mrb[0].mxu0
  %v1006 = vadd.f32 %v926, %v1005
  %v1007 = vpop.f32.mrb[0].mxu0
  %1008 = vmatprep.mubr.bf16.mxu0 0
  %1009 = vmatmul.mubr.bf16.gmra.mrb[0].mxu0 %v324
  %v1010 = vpop.f32.mrb[0].mxu0
  %v1011 = vadd.f32 %v926, %v1010
  %v1012 = vpop.f32.mrb[0].mxu0
  %v1013 = vpop.f32.mrb[0].mxu0
  %v1014 = vadd.f32 %v926, %v1013
  %v1015 = vpop.f32.mrb[0].mxu0
  %1016 = vmatprep.mubr.bf16.mxu0 0
  %1017 = vmatmul.mubr.bf16.gmra.mrb[0].mxu0 %v325
  %v1018 = vpop.f32.mrb[0].mxu0
  %v1019 = vadd.f32 %v926, %v1018
  %v1020 = vpop.f32.mrb[0].mxu0
  %v1021 = vpop.f32.mrb[0].mxu0
  %v1022 = vadd.f32 %v926, %v1021
  %v1023 = vpop.f32.mrb[0].mxu0
  %1024 = vdwg.mxu0
  %1025 = vst [vmem:[%s8] sm:$0xff] %v963
  %1026 = vst [vmem:[%s8 + $0x8] sm:$0xff] %v966
  %1027 = vst [vmem:[%s8 + $0x10] sm:$0xff] %v971
  %1028 = vst [vmem:[%s8 + $0x18] sm:$0xff] %v974
  %1029 = vst [vmem:[%s8 + $0x20] sm:$0xff] %v979
  %1030 = vst [vmem:[%s8 + $0x28] sm:$0xff] %v982
  %1031 = vst [vmem:[%s8 + $0x30] sm:$0xff] %v987
  %1032 = vst [vmem:[%s8 + $0x38] sm:$0xff] %v990
  %1033 = vst [vmem:[%s8 + $0x40] sm:$0xff] %v995
  %1034 = vst [vmem:[%s8 + $0x48] sm:$0xff] %v998
  %1035 = vst [vmem:[%s8 + $0x50] sm:$0xff] %v1003
  %1036 = vst [vmem:[%s8 + $0x58] sm:$0xff] %v1006
  %1037 = vst [vmem:[%s8 + $0x60] sm:$0xff] %v1011
  %1038 = vst [vmem:[%s8 + $0x68] sm:$0xff] %v1014
  %1039 = vst [vmem:[%s8 + $0x70] sm:$0xff] %v1019
  %1040 = vst [vmem:[%s8 + $0x78] sm:$0xff] %v1022
  // Predicated region
  $region34: #{gcn_layer_3.1} parent=0 // pred_check
    _
  $region35: #{gcn_layer_3.1} parent=0 // pred_check_branch
    %1042 = sbr.rel (0) target = $region37
  $region36: #{gcn_layer_3.1} parent=0 // pred_region
    _
  $region37: #{gcn_layer_3.1} parent=0 // pred_fallthru
    _
  // Predicated region
  $region38: #{gcn_layer_3.1} parent=0 // pred_check
    _
  $region39: #{gcn_layer_3.1} parent=0 // pred_check_branch
    %1044 = sbr.rel (0) target = $region41
  $region40: #{gcn_layer_3.1} parent=0 // pred_region
    _
  $region41: #{gcn_layer_3.1} parent=0 // pred_fallthru
    _

</llo_original>
